<compile_context>
chip_gen: v6e
topology: v6e:2x2x1
jax: 0.10.0
libtpu: 0.0.40
codegen_flags: <defaults>
</compile_context>

<pallas_src>
import jax
import jax.numpy as jnp
from jax.experimental import pallas as pl
from jax.experimental.pallas import tpu as pltpu


def _lsqv2_kernel(params_ref, x_ref, code_ref, quant_ref, dequant_ref):
    # params_ref (SMEM, f32): [scale, beta, inv_scale, qmin, qmax]
    scale = params_ref[0]
    beta = params_ref[1]
    inv_scale = params_ref[2]
    qmin = params_ref[3]
    qmax = params_ref[4]

    x = x_ref[...].astype(jnp.float32)

    code = jnp.clip((x - beta) * inv_scale, qmin, qmax)
    quant = jnp.round(code)            # forward value of ste(code)
    dequant = quant * scale + beta

    code_ref[...] = code.astype(code_ref.dtype)
    quant_ref[...] = quant.astype(quant_ref.dtype)
    dequant_ref[...] = dequant.astype(dequant_ref.dtype)


def lsqv2_forward(x, scale, beta, qmin, qmax, *, tile_rows=2048):
    """Pallas implementation of LSQV2.forward. Returns (code, quant, dequant)."""
    orig_shape = x.shape
    dtype = x.dtype
    LANE = 128

    flat = x.reshape(-1)
    n = flat.shape[0]
    pad = (-n) % LANE
    if pad:
        # Only pad the final partial 128-lane row (no-op for typical NCHW sizes).
        flat = jnp.concatenate([flat, jnp.zeros((pad,), dtype=dtype)])
    rows = flat.shape[0] // LANE
    x2 = flat.reshape(rows, LANE)

    # Row tile: full extent for small inputs (always a legal block shape),
    # otherwise a multiple-of-8 tile; partial trailing blocks are masked by
    # Pallas automatically.
    tr = rows if rows <= tile_rows else tile_rows
    grid = (pl.cdiv(rows, tr),)

    params = jnp.array(
        [scale, beta, 1.0 / scale, qmin, qmax], dtype=jnp.float32)

    def blk():
        return pl.BlockSpec((tr, LANE), lambda i: (i, 0))

    n_total = rows * LANE
    itemsize = jnp.dtype(dtype).itemsize
    cost = pl.CostEstimate(
        flops=7 * n_total,
        transcendentals=0,
        bytes_accessed=4 * n_total * itemsize,  # 1 read + 3 writes
    )

    out_sds = jax.ShapeDtypeStruct((rows, LANE), dtype)
    code2, quant2, dequant2 = pl.pallas_call(
        _lsqv2_kernel,
        grid=grid,
        out_shape=(out_sds, out_sds, out_sds),
        in_specs=[
            pl.BlockSpec(memory_space=pltpu.MemorySpace.SMEM),  # params
            blk(),                                              # x tile
        ],
        out_specs=(blk(), blk(), blk()),
        compiler_params=pltpu.CompilerParams(
            dimension_semantics=("parallel",)),
        cost_estimate=cost,
    )(params, x2)

    def _unflatten(a):
        if pad:
            return a.reshape(-1)[:n].reshape(orig_shape)
        return a.reshape(orig_shape)

    return _unflatten(code2), _unflatten(quant2), _unflatten(dequant2)


def lsqv2_reference(x, scale, beta, qmin, qmax):
    """Pure-JAX reference matching the PyTorch module's forward values."""
    code = jnp.clip((x - beta) / scale, qmin, qmax)
    quant = jnp.round(code)
    dequant = quant * scale + beta
    return code, quant, dequant


# TODO(synk): grad_scale/ste only alter gradients (straight-through estimator);
# only the forward pass is implemented here. per_channel / init_data are
# host-side parameter management, not kernel work.

if __name__ == "__main__":
    # LSQV2(bits=4, signed=False) -> qmin=0, qmax=15.
    bits = 4
    qmin = 0.0
    qmax = float(2 ** bits - 1)

    key = jax.random.PRNGKey(0)
    x = jax.random.normal(key, (2, 4, 16, 16), dtype=jnp.float32)

    # Emulate init_data(): scale = (max - min) / (qmax - qmin), beta = min.
    t_min = float(jnp.min(x))
    t_max = float(jnp.max(x))
    scale = (t_max - t_min) / (qmax - qmin)
    beta = t_min

    code, quant, dequant = lsqv2_forward(x, scale, beta, qmin, qmax)
    jax.block_until_ready((code, quant, dequant))

    code_r, quant_r, dequant_r = lsqv2_reference(x, scale, beta, qmin, qmax)
    assert jnp.allclose(code, code_r, rtol=1e-5, atol=1e-5)
    assert jnp.allclose(quant, quant_r, rtol=1e-5, atol=1e-5)
    assert jnp.allclose(dequant, dequant_r, rtol=1e-5, atol=1e-5)

    print("KERNEL_OK")
</pallas_src>

<mosaic_0001>
module attributes {stable_mosaic.version = 11 : i64} {
  func.func @_lsqv2_kernel(%arg0: i32, %arg1: memref<5xf32, #tpu.memory_space<smem>>, %arg2: memref<16x128xf32, #tpu.memory_space<vmem>>, %arg3: memref<16x128xf32, #tpu.memory_space<vmem>>, %arg4: memref<16x128xf32, #tpu.memory_space<vmem>>, %arg5: memref<16x128xf32, #tpu.memory_space<vmem>>) attributes {dimension_semantics = [#tpu.dimension_semantics<parallel>], iteration_bounds = array<i64: 1>, scalar_prefetch = 0 : i64, scratch_operands = 0 : i64, tpu.core_type = #tpu.core_type<tc>, window_params = [{transform_indices = @transform_0, window_bounds = array<i64: 5>}, {transform_indices = @transform_1, window_bounds = array<i64: 16, 128>}, {transform_indices = @transform_2, window_bounds = array<i64: 16, 128>}, {transform_indices = @transform_3, window_bounds = array<i64: 16, 128>}, {transform_indices = @transform_4, window_bounds = array<i64: 16, 128>}]} {
    %c0 = arith.constant 0 : index
    %0 = memref.load %arg1[%c0] : memref<5xf32, #tpu.memory_space<smem>>
    %c1 = arith.constant 1 : index
    %1 = memref.load %arg1[%c1] : memref<5xf32, #tpu.memory_space<smem>>
    %c2 = arith.constant 2 : index
    %2 = memref.load %arg1[%c2] : memref<5xf32, #tpu.memory_space<smem>>
    %c3 = arith.constant 3 : index
    %3 = memref.load %arg1[%c3] : memref<5xf32, #tpu.memory_space<smem>>
    %c4 = arith.constant 4 : index
    %4 = memref.load %arg1[%c4] : memref<5xf32, #tpu.memory_space<smem>>
    %c0_0 = arith.constant 0 : index
    %c0_1 = arith.constant 0 : index
    %5 = vector.load %arg2[%c0_0, %c0_1] : memref<16x128xf32, #tpu.memory_space<vmem>>, vector<16x128xf32>
    %6 = vector.broadcast %1 : f32 to vector<16x128xf32>
    %7 = arith.subf %5, %6 : vector<16x128xf32>
    %8 = vector.broadcast %2 : f32 to vector<16x128xf32>
    %9 = arith.mulf %7, %8 : vector<16x128xf32>
    %10 = vector.broadcast %3 : f32 to vector<16x128xf32>
    %11 = arith.maximumf %10, %9 : vector<16x128xf32>
    %12 = vector.broadcast %4 : f32 to vector<16x128xf32>
    %13 = arith.minimumf %12, %11 : vector<16x128xf32>
    %14 = math.roundeven %13 : vector<16x128xf32>
    %15 = vector.broadcast %0 : f32 to vector<16x128xf32>
    %16 = arith.mulf %14, %15 : vector<16x128xf32>
    %17 = vector.broadcast %1 : f32 to vector<16x128xf32>
    %18 = arith.addf %16, %17 : vector<16x128xf32>
    %c0_2 = arith.constant 0 : index
    %c0_3 = arith.constant 0 : index
    %19 = vector.load %arg3[%c0_2, %c0_3] : memref<16x128xf32, #tpu.memory_space<vmem>>, vector<16x128xf32>
    tpu.vector_store %arg3[%c0_2, %c0_3], %13 {strides = array<i32>} : memref<16x128xf32, #tpu.memory_space<vmem>>, vector<16x128xf32>,
    %c0_4 = arith.constant 0 : index
    %c0_5 = arith.constant 0 : index
    %20 = vector.load %arg4[%c0_4, %c0_5] : memref<16x128xf32, #tpu.memory_space<vmem>>, vector<16x128xf32>
    tpu.vector_store %arg4[%c0_4, %c0_5], %14 {strides = array<i32>} : memref<16x128xf32, #tpu.memory_space<vmem>>, vector<16x128xf32>,
    %c0_6 = arith.constant 0 : index
    %c0_7 = arith.constant 0 : index
    %21 = vector.load %arg5[%c0_6, %c0_7] : memref<16x128xf32, #tpu.memory_space<vmem>>, vector<16x128xf32>
    tpu.vector_store %arg5[%c0_6, %c0_7], %18 {strides = array<i32>} : memref<16x128xf32, #tpu.memory_space<vmem>>, vector<16x128xf32>,
    return
  }
  func.func @transform_0(%arg0: i32) -> i32 {
    %c0_i32 = arith.constant 0 : i32
    %c0_i32_0 = arith.constant 0 : i32
    return %c0_i32 : i32
  }
  func.func @transform_1(%arg0: i32) -> (i32, i32) {
    %c0_i32 = arith.constant 0 : i32
    %c0_i32_0 = arith.constant 0 : i32
    return %arg0, %c0_i32 : i32, i32
  }
  func.func @transform_2(%arg0: i32) -> (i32, i32) {
    %c0_i32 = arith.constant 0 : i32
    %c0_i32_0 = arith.constant 0 : i32
    return %arg0, %c0_i32 : i32, i32
  }
  func.func @transform_3(%arg0: i32) -> (i32, i32) {
    %c0_i32 = arith.constant 0 : i32
    %c0_i32_0 = arith.constant 0 : i32
    return %arg0, %c0_i32 : i32, i32
  }
  func.func @transform_4(%arg0: i32) -> (i32, i32) {
    %c0_i32 = arith.constant 0 : i32
    %c0_i32_0 = arith.constant 0 : i32
    return %arg0, %c0_i32 : i32, i32
  }
}

</mosaic_0001>

<llo_original>
// kernel: tpu_custom_call.1
$region0: #{tpu_custom_call.1}
  #allocation0 [shape = 'u32[]', space=smem, size = 0x4, offset = 0x4, fixed_abs, tag = 'smem constant byte address 0x4 - core index']
  #allocation1 [shape = 'u32[144,128]{1,0:T(1,128)}', space=vmem, size = 0x12000, scoped, tag = 'internal scratch']
  %s0 = inlined_call_operand.hbm [shape: f32[5], index: 0, kind: input, shape index: {}]
  %s1 = inlined_call_operand.hbm [shape: f32[16,128], index: 1, kind: input, shape index: {}]
  %s2 = inlined_call_operand.hbm [shape: f32[16,128], index: 2, kind: output, shape index: {0}]
  %s3 = inlined_call_operand.hbm [shape: f32[16,128], index: 3, kind: output, shape index: {1}]
  %s4 = inlined_call_operand.hbm [shape: f32[16,128], index: 4, kind: output, shape index: {2}]
  %5 = xla_tuple %s2, %s3, %s4
  %s6 = sld [smem:[#allocation0]]
  $region42: #{tpu_custom_call.1} parent=0
    _
  %s8 = ssub.s32 1, %s6
  %s9 = scalar_select 0, %s8, %s6
  $region1: #{tpu_custom_call.1} parent=0
    #allocation2 [shape = 'u8[512]{0}', space=smem, size = 0x200, scoped, tag = 'input window, operand 0, single buffered']
    #allocation3 [shape = 's32[1]{0}', space=sflag, size = 0x4, scoped, tag = 'scoped memory for tpu_custom_call.1']
    #allocation4 [shape = 's32[1]{0}', space=sflag, size = 0x4, scoped, tag = 'scoped memory for tpu_custom_call.1']
    #allocation5 [shape = 's32[1]{0}', space=sflag, size = 0x4, scoped, tag = 'scoped memory for tpu_custom_call.1']
    #allocation6 [shape = 'u8[8192]{0}', space=vmem, size = 0x2000, scoped, tag = 'input window, operand 1, single buffered']
    #allocation7 [shape = 'u8[8192]{0}', space=vmem, size = 0x2000, scoped, tag = 'output window, operand 0, single buffered']
    #allocation8 [shape = 'u8[8192]{0}', space=vmem, size = 0x2000, scoped, tag = 'output window, operand 1, single buffered']
    #allocation9 [shape = 's32[1]{0}', space=sflag, size = 0x4, scoped, tag = 'scoped memory for tpu_custom_call.1']
    #allocation10 [shape = 'u8[8192]{0}', space=vmem, size = 0x2000, scoped, tag = 'output window, operand 2, single buffered']
    %10 = vsyncpa [#allocation5], 0
    %11 = vsyncpa [#allocation3], 0
    %12 = vsyncpa [#allocation4], 0
    %13 = vsyncpa [#allocation9], 0
    // Predicated region
    $region2: #{tpu_custom_call.1} parent=1 // pred_check
      _
    $region3: #{tpu_custom_call.1} parent=1 // pred_check_branch
      %15 = sbr.rel (0) target = $region5
    $region4: #{tpu_custom_call.1} parent=1 // pred_region
      %s17 = ssub.s32 16, 16
      %18 = vsyncadd [#allocation5], %s17
      %21 = dma.hbm_to_smem %s0, 16, [#allocation2], [#allocation5]
    $region5: #{tpu_custom_call.1} parent=1 // pred_fallthru
      _
    // Predicated region
    $region6: #{tpu_custom_call.1} parent=1 // pred_check
      _
    $region7: #{tpu_custom_call.1} parent=1 // pred_check_branch
      %23 = sbr.rel (0) target = $region9
    $region8: #{tpu_custom_call.1} parent=1 // pred_region
      %s25 = ssub.s32 256, 256
      %26 = vsyncadd [#allocation3], %s25
      %s27 = sshll.u32 [#allocation6], 4
      %s28 = int_to_ptr.vmem [resolvable:$true] %s27
      %33 = dma.hbm_to_vmem [thread:$0]  %s1, 256, %s28, [#allocation3], 128, 128, 8
    $region9: #{tpu_custom_call.1} parent=1 // pred_fallthru
      _
    // Predicated region
    $region10: #{tpu_custom_call.1} parent=1 // pred_check
      _
    $region11: #{tpu_custom_call.1} parent=1 // pred_check_branch
      %35 = sbr.rel (0) target = $region13
    $region12: #{tpu_custom_call.1} parent=1 // pred_region
      %36 = dma.done [#allocation5], 16
    $region13: #{tpu_custom_call.1} parent=1 // pred_fallthru
      _
    // Predicated region
    $region14: #{tpu_custom_call.1} parent=1 // pred_check
      _
    $region15: #{tpu_custom_call.1} parent=1 // pred_check_branch
      %38 = sbr.rel (0) target = $region17
    $region16: #{tpu_custom_call.1} parent=1 // pred_region
      %39 = dma.done [#allocation3], 256
    $region17: #{tpu_custom_call.1} parent=1 // pred_fallthru
      _
    %40 = sfence
    %s41 = sld [smem:[#allocation2]]
    %s42 = sld [smem:[#allocation2 + $0x1]]
    %s43 = sld [smem:[#allocation2 + $0x2]]
    %s44 = sld [smem:[#allocation2 + $0x3]]
    %s45 = sld [smem:[#allocation2 + $0x4]]
    %v46 = vld [vmem:[#allocation6] sm:$0xff]
    %v47 = vld [vmem:[#allocation6 + $0x8] sm:$0xff]
    %v48 = vstv %s42
    %v49 = vsub.f32 %v46, %v48
    %v50 = vsub.f32 %v47, %v48
    %v51 = vstv %s43
    %v52 = vmul.f32 %v49, %v51
    %v53 = vmul.f32 %v50, %v51
    %v54 = vstv %s44
    %v55 = vmax.f32 %v54, %v52
    %v56 = vmax.f32 %v54, %v53
    %v57 = vstv %s45
    %v58 = vmin.f32 %v57, %v55
    %v59 = vmin.f32 %v57, %v56
    %v60 = vround.ne.pseudo %v58
    %v61 = vround.ne.pseudo %v59
    %v62 = vstv %s41
    %v63 = vmul.f32 %v60, %v62
    %v64 = vmul.f32 %v61, %v62
    %v65 = vadd.f32 %v63, %v48
    %v66 = vadd.f32 %v64, %v48
    %67 = vst [vmem:[#allocation7] sm:$0xff] %v58
    %68 = vst [vmem:[#allocation7 + $0x8] sm:$0xff] %v59
    %69 = vst [vmem:[#allocation8] sm:$0xff] %v60
    %70 = vst [vmem:[#allocation8 + $0x8] sm:$0xff] %v61
    %71 = vst [vmem:[#allocation10] sm:$0xff] %v65
    %72 = vst [vmem:[#allocation10 + $0x8] sm:$0xff] %v66
    // Predicated region
    $region18: #{tpu_custom_call.1} parent=1 // pred_check
      _
    $region19: #{tpu_custom_call.1} parent=1 // pred_check_branch
      %74 = sbr.rel (0) target = $region21
    $region20: #{tpu_custom_call.1} parent=1 // pred_region
      %s76 = ssub.s32 256, 256
      %77 = vsyncadd [#allocation4], %s76
      %s78 = sshll.u32 [#allocation7], 4
      %s79 = int_to_ptr.vmem [resolvable:$true] %s78
      %84 = dma.vmem_to_hbm [thread:$0]  %s79, 256, %s2, [#allocation4], 128, 128, 8
    $region21: #{tpu_custom_call.1} parent=1 // pred_fallthru
      _
    // Predicated region
    $region22: #{tpu_custom_call.1} parent=1 // pred_check
      _
    $region23: #{tpu_custom_call.1} parent=1 // pred_check_branch
      %86 = sbr.rel (0) target = $region25
    $region24: #{tpu_custom_call.1} parent=1 // pred_region
      %s88 = ssub.s32 256, 256
      %89 = vsyncadd [#allocation9], %s88
      %s90 = sshll.u32 [#allocation8], 4
      %s91 = int_to_ptr.vmem [resolvable:$true] %s90
      %96 = dma.vmem_to_hbm [thread:$0]  %s91, 256, %s3, [#allocation9], 128, 128, 8
    $region25: #{tpu_custom_call.1} parent=1 // pred_fallthru
      _
    // Predicated region
    $region26: #{tpu_custom_call.1} parent=1 // pred_check
      _
    $region27: #{tpu_custom_call.1} parent=1 // pred_check_branch
      %98 = sbr.rel (0) target = $region29
    $region28: #{tpu_custom_call.1} parent=1 // pred_region
      %s100 = ssub.s32 256, 256
      %101 = vsyncadd [#allocation9], %s100
      %s102 = sshll.u32 [#allocation10], 4
      %s103 = int_to_ptr.vmem [resolvable:$true] %s102
      %108 = dma.vmem_to_hbm [thread:$0]  %s103, 256, %s4, [#allocation9], 128, 128, 8
    $region29: #{tpu_custom_call.1} parent=1 // pred_fallthru
      _
    // Predicated region
    $region30: #{tpu_custom_call.1} parent=1 // pred_check
      _
    $region31: #{tpu_custom_call.1} parent=1 // pred_check_branch
      %110 = sbr.rel (0) target = $region33
    $region32: #{tpu_custom_call.1} parent=1 // pred_region
      %111 = dma.done [#allocation4], 256
    $region33: #{tpu_custom_call.1} parent=1 // pred_fallthru
      _
    // Predicated region
    $region34: #{tpu_custom_call.1} parent=1 // pred_check
      _
    $region35: #{tpu_custom_call.1} parent=1 // pred_check_branch
      %113 = sbr.rel (0) target = $region37
    $region36: #{tpu_custom_call.1} parent=1 // pred_region
      %114 = dma.done [#allocation9], 256
    $region37: #{tpu_custom_call.1} parent=1 // pred_fallthru
      _
    // Predicated region
    $region38: #{tpu_custom_call.1} parent=1 // pred_check
      _
    $region39: #{tpu_custom_call.1} parent=1 // pred_check_branch
      %116 = sbr.rel (0) target = $region41
    $region40: #{tpu_custom_call.1} parent=1 // pred_region
      %117 = dma.done [#allocation9], 256
    $region41: #{tpu_custom_call.1} parent=1 // pred_fallthru
      _
    %118 = vsyncpa [#allocation3], 1
    %119 = vsyncpa [#allocation4], 1
    %120 = vsyncpa [#allocation9], 1
    %121 = vsyncpa [#allocation5], 1

</llo_original>
